<compile_context>
chip_gen: v5e
topology: v5e:2x2
jax: 0.10.0
libtpu: 0.0.40
codegen_flags: <defaults>
</compile_context>

<pallas_src>
import jax
import jax.numpy as jnp
from jax.experimental import pallas as pl
from jax.experimental.pallas import tpu as pltpu


def _round_up(x, m):
    return (x + m - 1) // m * m


def _gemm_bias_relu_kernel(p_ref, w_ref, b_ref, o_ref):
    """One grid step = one (M_tile, K_p) tile of im2col patches.

    p_ref: (M_tile, K_p)    bf16 im2col patches (K_p = 9*Cin padded to 128*k)
    w_ref: (K_p, Cout_p)    bf16 folded conv weights (constant map, VMEM-resident)
    b_ref: (1, Cout_p)      f32 bias
    o_ref: (M_tile, Cout_p) bf16 output tile (lane-dense)
    """
    acc = jax.lax.dot_general(
        p_ref[...], w_ref[...],
        dimension_numbers=(((1,), (0,)), ((), ())),
        preferred_element_type=jnp.float32)       # f32 accumulation on the MXU
    acc = acc + b_ref[...]                        # (1, Cout_p) broadcasts over rows
    o_ref[...] = jnp.maximum(acc, 0.0).astype(o_ref.dtype)


def conv3x3_relu_pallas(x_nhwc, w_hwio, bias, *, m_tile=512,
                        vmem_limit_bytes=32 * 1024 * 1024):
    """3x3 conv (stride 1, pad 1) + ReLU as a fused im2col GEMM Pallas kernel.

    x_nhwc: (N, H, W, Cin) f32  ->  (N, H, W, Cout) f32.
    """
    N, H, W, Cin = x_nhwc.shape
    Cout = w_hwio.shape[-1]

    K = 9 * Cin
    K_p = _round_up(K, 128)          # lane-dense LHS + deep MXU contraction
    Cout_p = _round_up(Cout, 128)    # lane-dense (unmasked) output stores

    # ---- wrapper-side im2col (one-time XLA cost, not per grid step) --------
    # TODO(synk): for Cin >= 128 (deep VGG layers) a direct per-tap kernel
    # avoids the 9x im2col read amplification; only the small-Cin fold-all-taps
    # path is implemented here.
    x_bf16 = x_nhwc.astype(jnp.bfloat16)
    x_pad = jnp.pad(x_bf16, ((0, 0), (1, 1), (1, 1), (0, 0)))
    taps = [x_pad[:, kh:kh + H, kw:kw + W, :]
            for kh in range(3) for kw in range(3)]
    patches = jnp.concatenate(taps, axis=-1)             # (N, H, W, 9*Cin)
    patches = patches.reshape(N * H * W, K)              # rows in (n, h, w) order

    M = N * H * W
    m_tile = min(m_tile, _round_up(M, 8))
    M_p = _round_up(M, m_tile)
    patches = jnp.pad(patches, ((0, M_p - M), (0, K_p - K)))

    # HWIO flattens as (kh, kw, ci) — matches the tap concat order above.
    w_flat = w_hwio.reshape(K, Cout).astype(jnp.bfloat16)
    w_p = jnp.pad(w_flat, ((0, K_p - K), (0, Cout_p - Cout)))
    b_p = jnp.pad(bias, (0, Cout_p - Cout)).reshape(1, Cout_p)

    grid = (M_p // m_tile,)

    y = pl.pallas_call(
        _gemm_bias_relu_kernel,
        out_shape=jax.ShapeDtypeStruct((M_p, Cout_p), jnp.bfloat16),
        grid_spec=pltpu.PrefetchScalarGridSpec(
            num_scalar_prefetch=0,
            grid=grid,
            in_specs=[
                pl.BlockSpec((m_tile, K_p), lambda m: (m, 0)),
                # Constant index maps: weights/bias fetched once, stay in VMEM.
                pl.BlockSpec((K_p, Cout_p), lambda m: (0, 0)),
                pl.BlockSpec((1, Cout_p), lambda m: (0, 0)),
            ],
            out_specs=pl.BlockSpec((m_tile, Cout_p), lambda m: (m, 0)),
        ),
        compiler_params=pltpu.CompilerParams(
            # All M-tiles are independent -> shard across v7x TensorCores.
            dimension_semantics=("parallel",),
            # v5e: default scoped VMEM is only 16 MiB, so keep this explicit.
            # v6e: can be raised to ~64-96 MiB with a larger m_tile.
            # v7x: keep 2*(in+out blocks) + weights well under ~48 MiB.
            vmem_limit_bytes=vmem_limit_bytes),
    )(patches, w_p, b_p)

    y = y[:M, :Cout].reshape(N, H, W, Cout)
    return y.astype(jnp.float32)   # keep the module's f32 -> f32 interface


def time_distributed_forward(x, w_hwio, bias, batch_first=True):
    """x: (B, T, C, H, W) f32 (NCHW per frame), matching the PyTorch module."""
    B, T, C, H, W = x.shape
    # x.contiguous().view(-1, C, H, W)
    x_flat = x.reshape(B * T, C, H, W)
    # NCHW -> NHWC so channels sit on the 128-lane axis inside the kernel.
    x_nhwc = jnp.transpose(x_flat, (0, 2, 3, 1))
    y_nhwc = conv3x3_relu_pallas(x_nhwc, w_hwio, bias)
    # Back to NCHW so the flatten matches PyTorch's C*H*W ordering.
    y_nchw = jnp.transpose(y_nhwc, (0, 3, 1, 2))          # (B*T, Cout, H, W)
    if batch_first:
        return y_nchw.reshape(B, T, -1)
    # Reference module's `else:` branch is `pass` -> return un-reshaped output.
    return y_nchw


def _reference(x, w_hwio, bias):
    """Pure-JAX f32 reference (conv + bias + relu + TimeDistributed reshape)."""
    B, T, C, H, W = x.shape
    x_flat = x.reshape(B * T, C, H, W)
    w_oihw = jnp.transpose(w_hwio, (3, 2, 0, 1))          # OIHW
    y = jax.lax.conv_general_dilated(
        x_flat, w_oihw, window_strides=(1, 1), padding=((1, 1), (1, 1)),
        dimension_numbers=("NCHW", "OIHW", "NCHW"))
    y = jnp.maximum(y + bias[None, :, None, None], 0.0)
    return y.reshape(B, T, -1)


if __name__ == "__main__":
    key = jax.random.PRNGKey(0)
    B, T, C_in, H, W = 2, 4, 4, 16, 16
    C_out = 8

    k_x, k_w, k_b = jax.random.split(key, 3)
    x = jax.random.normal(k_x, (B, T, C_in, H, W), dtype=jnp.float32)
    # Deterministic, PyTorch-like uniform init for Conv2d(C_in, C_out, 3).
    fan_in = C_in * 3 * 3
    bound = 1.0 / (fan_in ** 0.5)
    w_hwio = jax.random.uniform(k_w, (3, 3, C_in, C_out), jnp.float32,
                                minval=-bound, maxval=bound)
    bias = jax.random.uniform(k_b, (C_out,), jnp.float32,
                              minval=-bound, maxval=bound)

    y = time_distributed_forward(x, w_hwio, bias, batch_first=True)
    y = jax.block_until_ready(y)

    y_ref = _reference(x, w_hwio, bias)
    assert y.shape == (B, T, C_out * H * W), y.shape
    # bf16 MXU inputs + bf16 stores -> loosened tolerance vs. the f32 reference.
    assert jnp.allclose(y, y_ref, atol=3e-2, rtol=3e-2), "mismatch vs reference"

    print("KERNEL_OK")
</pallas_src>

<mosaic_0001>
module attributes {stable_mosaic.version = 11 : i64} {
  func.func @_gemm_bias_relu_kernel(%arg0: i32, %arg1: memref<512x128xbf16, #tpu.memory_space<vmem>>, %arg2: memref<128x128xbf16, #tpu.memory_space<vmem>>, %arg3: memref<1x128xf32, #tpu.memory_space<vmem>>, %arg4: memref<512x128xbf16, #tpu.memory_space<vmem>>) attributes {dimension_semantics = [#tpu.dimension_semantics<parallel>], iteration_bounds = array<i64: 4>, scalar_prefetch = 0 : i64, scratch_operands = 0 : i64, tpu.core_type = #tpu.core_type<tc>, window_params = [{transform_indices = @transform_0, window_bounds = array<i64: 512, 128>}, {pipeline_mode = #tpu.pipeline_mode<synchronous>, transform_indices = @transform_1, window_bounds = array<i64: 128, 128>}, {pipeline_mode = #tpu.pipeline_mode<synchronous>, transform_indices = @transform_2, window_bounds = array<i64: 1, 128>}, {transform_indices = @transform_3, window_bounds = array<i64: 512, 128>}]} {
    %c0 = arith.constant 0 : index
    %c0_0 = arith.constant 0 : index
    %0 = vector.load %arg1[%c0, %c0_0] : memref<512x128xbf16, #tpu.memory_space<vmem>>, vector<512x128xbf16>
    %c0_1 = arith.constant 0 : index
    %c0_2 = arith.constant 0 : index
    %1 = vector.load %arg2[%c0_1, %c0_2] : memref<128x128xbf16, #tpu.memory_space<vmem>>, vector<128x128xbf16>
    %cst = arith.constant dense<0.000000e+00> : vector<512x128xf32>
    %2 = tpu.matmul %0, %1, %cst {dimension_numbers = #tpu.dot_dimension_numbers<[1], [0], [0], [1], [0, 0, 1, 1], [], []>} : vector<512x128xbf16>, vector<128x128xbf16>, vector<512x128xf32> -> vector<512x128xf32>
    %c0_3 = arith.constant 0 : index
    %c0_4 = arith.constant 0 : index
    %3 = vector.load %arg3[%c0_3, %c0_4] : memref<1x128xf32, #tpu.memory_space<vmem>>, vector<1x128xf32>
    %4 = vector.broadcast %3 : vector<1x128xf32> to vector<512x128xf32>
    %5 = arith.addf %2, %4 : vector<512x128xf32>
    %cst_5 = arith.constant 0.000000e+00 : f32
    %6 = vector.broadcast %cst_5 : f32 to vector<512x128xf32>
    %7 = arith.maximumf %5, %6 : vector<512x128xf32>
    %8 = arith.truncf %7 : vector<512x128xf32> to vector<512x128xbf16>
    %c0_6 = arith.constant 0 : index
    %c0_7 = arith.constant 0 : index
    %9 = vector.load %arg4[%c0_6, %c0_7] : memref<512x128xbf16, #tpu.memory_space<vmem>>, vector<512x128xbf16>
    tpu.vector_store %arg4[%c0_6, %c0_7], %8 {strides = array<i32>} : memref<512x128xbf16, #tpu.memory_space<vmem>>, vector<512x128xbf16>,
    return
  }
  func.func @transform_0(%arg0: i32) -> (i32, i32) {
    %c0_i32 = arith.constant 0 : i32
    %c0_i32_0 = arith.constant 0 : i32
    return %arg0, %c0_i32 : i32, i32
  }
  func.func @transform_1(%arg0: i32) -> (i32, i32) {
    %c0_i32 = arith.constant 0 : i32
    %c0_i32_0 = arith.constant 0 : i32
    %c0_i32_1 = arith.constant 0 : i32
    return %c0_i32, %c0_i32_0 : i32, i32
  }
  func.func @transform_2(%arg0: i32) -> (i32, i32) {
    %c0_i32 = arith.constant 0 : i32
    %c0_i32_0 = arith.constant 0 : i32
    %c0_i32_1 = arith.constant 0 : i32
    return %c0_i32, %c0_i32_0 : i32, i32
  }
  func.func @transform_3(%arg0: i32) -> (i32, i32) {
    %c0_i32 = arith.constant 0 : i32
    %c0_i32_0 = arith.constant 0 : i32
    return %arg0, %c0_i32 : i32, i32
  }
}

</mosaic_0001>

<llo_original>
// kernel: tpu_custom_call.1
$region0: #{tpu_custom_call.1}
  #allocation0 [shape = 'u32[]', space=smem, size = 0x4, offset = 0x4, fixed_abs, tag = 'smem constant byte address 0x4 - core index']
  #allocation1 [shape = 'u32[72,128]{1,0:T(1,128)}', space=vmem, size = 0x9000, scoped, tag = 'internal scratch']
  %s0 = inlined_call_operand.hbm [shape: bf16[2048,128], index: 0, kind: input, shape index: {}]
  %s1 = inlined_call_operand.hbm [shape: bf16[128,128], index: 1, kind: input, shape index: {}]
  %s2 = inlined_call_operand.vmem [shape: f32[1,128], index: 2, kind: input, shape index: {}]
  %s3 = inlined_call_operand.hbm [shape: bf16[2048,128], index: 3, kind: output, shape index: {}]
  %s4 = sld [smem:[#allocation0]]
  $region53: #{tpu_custom_call.1} parent=0
    _
  %s6 = ssub.s32 1, %s4
  %s7 = scalar_select 0, %s6, %s4
  $region1: #{tpu_custom_call.1} parent=0
    #allocation2 [shape = 'u8[262144]{0}', space=vmem, size = 0x40000, scoped, tag = 'input window, operand 0']
    #allocation3 [shape = 's32[2]{0}', space=sflag, size = 0x8, scoped, tag = 'scoped memory for tpu_custom_call.1']
    #allocation4 [shape = 's32[2]{0}', space=sflag, size = 0x8, scoped, tag = 'scoped memory for tpu_custom_call.1']
    #allocation5 [shape = 'u8[32768]{0}', space=vmem, size = 0x8000, scoped, tag = 'input window, operand 1, single buffered']
    #allocation6 [shape = 's32[1]{0}', space=sflag, size = 0x4, scoped, tag = 'scoped memory for tpu_custom_call.1']
    #allocation7 [shape = 'u8[262144]{0}', space=vmem, size = 0x40000, scoped, tag = 'output window, operand 0']
    %8 = vsyncpa [#allocation3], 0
    %s9 = scalar_lea.sflag [#allocation3], 1
    %10 = vsyncpa %s9, 0
    %11 = vsyncpa [#allocation6], 0
    %12 = vsyncpa [#allocation4], 0
    %s13 = scalar_lea.sflag [#allocation4], 1
    %14 = vsyncpa %s13, 0
    loop: start=0, step=1, limit=6
    $region2: #{tpu_custom_call.1} parent=1 // loop_pre_header
      _
    $region3: #{tpu_custom_call.1} parent=1 // loop_header
      %s16 = sphi 0, %s20
      %p17 = scmp.ge.s32.totalorder %s16, 6
      %s26 = sphi 0, %s28
      %s29 = sphi 0, %s26
      %s30 = sphi 0, %s29
      %s46 = sphi 0, %s30
      %s50 = sphi 0, %s50
      %s52 = sphi 0, %s50
      %s53 = sphi 0, %s52
      %s67 = sphi 0, %s53
      %s71 = sphi 0, %s71
      %s73 = sphi 0, %s71
      %s74 = sphi 0, %s73
      %s88 = sphi 0, %s74
      %s94 = sphi 0, %s96
      %s97 = sphi 0, %s94
      %s98 = sphi 0, %s97
      %s114 = sphi 0, %s98
    $region4: #{tpu_custom_call.1} parent=1 // loop_header_branch
      %19 = sbr.rel (%p17) target = $region8
    $region5: #{tpu_custom_call.1} parent=1 // loop_body
      %s21 = ssub.s32 %s16, 1
      %s22 = ssub.s32 %s16, 2
      %s23 = sadd.s32 %s16, 1
      %s24 = ssub.s32 %s16, %s23
      %p25 = scmp.eq.s32.totalorder %s24, 0
      %s27 = sadd.s32 %s26, 1
      %s28 = scalar_select %p25, %s26, %s27
      %p31 = pneg %p25
      %p32 = scmp.eq.s32.totalorder %s16, 3
      %p33 = por %p31, %p32
      %p34 = scmp.ne.s32.totalorder %s26, %s29
      %p35 = scmp.eq.s32.totalorder %s16, 0
      %p36 = por %p34, %p35
      %p37 = scmp.ne.s32.totalorder %s26, %s29
      %p38 = scmp.eq.s32.totalorder %s21, 3
      %p39 = por %p37, %p38
      %p40 = scmp.ne.s32.totalorder %s29, %s30
      %p41 = scmp.eq.s32.totalorder %s21, 0
      %p42 = por %p40, %p41
      %p43 = scmp.ne.s32.totalorder %s29, %s30
      %p44 = scmp.eq.s32.totalorder %s22, 3
      %p45 = por %p43, %p44
      %p47 = scmp.ne.s32.totalorder %s30, %s46
      %p48 = scmp.eq.s32.totalorder %s22, 0
      %p49 = por %p47, %p48
      %s51 = sadd.s32 %s50, 1
      %p54 = scmp.eq.s32.totalorder %s16, 3
      %p55 = scmp.ne.s32.totalorder %s50, %s52
      %p56 = scmp.eq.s32.totalorder %s16, 0
      %p57 = por %p55, %p56
      %p58 = scmp.ne.s32.totalorder %s50, %s52
      %p59 = scmp.eq.s32.totalorder %s21, 3
      %p60 = por %p58, %p59
      %p61 = scmp.ne.s32.totalorder %s52, %s53
      %p62 = scmp.eq.s32.totalorder %s21, 0
      %p63 = por %p61, %p62
      %p64 = scmp.ne.s32.totalorder %s52, %s53
      %p65 = scmp.eq.s32.totalorder %s22, 3
      %p66 = por %p64, %p65
      %p68 = scmp.ne.s32.totalorder %s53, %s67
      %p69 = scmp.eq.s32.totalorder %s22, 0
      %p70 = por %p68, %p69
      %s72 = sadd.s32 %s71, 1
      %p75 = scmp.eq.s32.totalorder %s16, 3
      %p76 = scmp.ne.s32.totalorder %s71, %s73
      %p77 = scmp.eq.s32.totalorder %s16, 0
      %p78 = por %p76, %p77
      %p79 = scmp.ne.s32.totalorder %s71, %s73
      %p80 = scmp.eq.s32.totalorder %s21, 3
      %p81 = por %p79, %p80
      %p82 = scmp.ne.s32.totalorder %s73, %s74
      %p83 = scmp.eq.s32.totalorder %s21, 0
      %p84 = por %p82, %p83
      %p85 = scmp.ne.s32.totalorder %s73, %s74
      %p86 = scmp.eq.s32.totalorder %s22, 3
      %p87 = por %p85, %p86
      %p89 = scmp.ne.s32.totalorder %s74, %s88
      %p90 = scmp.eq.s32.totalorder %s22, 0
      %p91 = por %p89, %p90
      %s92 = ssub.s32 %s16, %s23
      %p93 = scmp.eq.s32.totalorder %s92, 0
      %s95 = sadd.s32 %s94, 1
      %s96 = scalar_select %p93, %s94, %s95
      %p99 = pneg %p93
      %p100 = scmp.eq.s32.totalorder %s16, 3
      %p101 = por %p99, %p100
      %p102 = scmp.ne.s32.totalorder %s94, %s97
      %p103 = scmp.eq.s32.totalorder %s16, 0
      %p104 = por %p102, %p103
      %p105 = scmp.ne.s32.totalorder %s94, %s97
      %p106 = scmp.eq.s32.totalorder %s21, 3
      %p107 = por %p105, %p106
      %p108 = scmp.ne.s32.totalorder %s97, %s98
      %p109 = scmp.eq.s32.totalorder %s21, 0
      %p110 = por %p108, %p109
      %p111 = scmp.ne.s32.totalorder %s97, %s98
      %p112 = scmp.eq.s32.totalorder %s22, 3
      %p113 = por %p111, %p112
      %p115 = scmp.ne.s32.totalorder %s98, %s114
      %p116 = scmp.eq.s32.totalorder %s22, 0
      %p117 = por %p115, %p116
      %p118 = scmp.le.s32.totalorder 1, %s16
      %p119 = scmp.lt.s32.totalorder %s16, 5
      %p120 = pnand %p118, %p119
      %p121 = pneg %p120
      // Predicated region
      $region9: #{tpu_custom_call.1} parent=5 // pred_check
        _
      $region10: #{tpu_custom_call.1} parent=5 // pred_check_branch
        %123 = sbr.rel (%p120) target = $region12
      $region11: #{tpu_custom_call.1} parent=5 // pred_region
        %s124 = ssub.s32 %s16, 1
        // Predicated region
        $region13: #{tpu_custom_call.1} parent=11 // pred_check
          %p125 = pneg %p63
        $region14: #{tpu_custom_call.1} parent=11 // pred_check_branch
          %127 = sbr.rel (%p125) target = $region16
        $region15: #{tpu_custom_call.1} parent=11 // pred_region
          %129 = vsyncadd [#allocation6], 0
          %s130 = sshll.u32 %s1, 4
          %s131 = int_to_ptr.hbm [resolvable:$true] %s130
          %s132 = sshll.u32 [#allocation5], 4
          %s133 = int_to_ptr.vmem [resolvable:$true] %s132
          %138 = dma.hbm_to_vmem [thread:$0]  %s131, 1024, %s133, [#allocation6], 64, 64, 4
        $region16: #{tpu_custom_call.1} parent=11 // pred_fallthru
          _
        // Predicated region
        $region17: #{tpu_custom_call.1} parent=11 // pred_check
          %p139 = pneg %p84
        $region18: #{tpu_custom_call.1} parent=11 // pred_check_branch
          %141 = sbr.rel (%p139) target = $region20
        $region19: #{tpu_custom_call.1} parent=11 // pred_region
          _
        $region20: #{tpu_custom_call.1} parent=11 // pred_fallthru
          _
      $region12: #{tpu_custom_call.1} parent=5 // pred_fallthru
        _
      %p142 = scmp.lt.s32.totalorder %s16, 4
      // Predicated region
      $region21: #{tpu_custom_call.1} parent=5 // pred_check
        %p143 = pneg %p142
      $region22: #{tpu_custom_call.1} parent=5 // pred_check_branch
        %145 = sbr.rel (%p143) target = $region24
      $region23: #{tpu_custom_call.1} parent=5 // pred_region
        // Predicated region
        $region25: #{tpu_custom_call.1} parent=23 // pred_check
          %p146 = pneg %p36
        $region26: #{tpu_custom_call.1} parent=23 // pred_check_branch
          %148 = sbr.rel (%p146) target = $region28
        $region27: #{tpu_custom_call.1} parent=23 // pred_region
          %s149 = sand.u32 %s26, 1
          %s150 = scalar_lea.sflag [#allocation3], %s149
          %s151 = sand.u32 %s26, 1
          %s152 = smul.addr %s151, 256
          %s153 = scalar_lea.vmem [#allocation2], %s152
          %s154 = smul.u32 64, %s16
          %156 = vsyncadd %s150, 0
          %s157 = smul.addr %s154, 4
          %s158 = scalar_lea.hbm %s0, %s157
          %s159 = sshll.u32 %s158, 4
          %s160 = int_to_ptr.hbm [resolvable:$true] %s159
          %s161 = sshll.u32 %s153, 4
          %s162 = int_to_ptr.vmem [resolvable:$true] %s161
          %167 = dma.hbm_to_vmem [thread:$0]  %s160, 4096, %s162, %s150, 64, 64, 4
        $region28: #{tpu_custom_call.1} parent=23 // pred_fallthru
          _
      $region24: #{tpu_custom_call.1} parent=5 // pred_fallthru
        _
      %p168 = scmp.le.s32.totalorder 1, %s16
      %p169 = scmp.lt.s32.totalorder %s16, 5
      %p170 = pnand %p168, %p169
      %p171 = pneg %p170
      // Predicated region
      $region29: #{tpu_custom_call.1} parent=5 // pred_check
        _
      $region30: #{tpu_custom_call.1} parent=5 // pred_check_branch
        %173 = sbr.rel (%p170) target = $region32
      $region31: #{tpu_custom_call.1} parent=5 // pred_region
        %s174 = ssub.s32 %s16, 1
        %s175 = sand.u32 %s29, 1
        %s176 = scalar_lea.sflag [#allocation3], %s175
        %s177 = sand.u32 %s29, 1
        %s178 = smul.addr %s177, 256
        %s179 = scalar_lea.vmem [#allocation2], %s178
        // Predicated region
        $region33: #{tpu_custom_call.1} parent=31 // pred_check
          %p180 = pneg %p42
        $region34: #{tpu_custom_call.1} parent=31 // pred_check_branch
          %182 = sbr.rel (%p180) target = $region36
        $region35: #{tpu_custom_call.1} parent=31 // pred_region
          %184 = dma.done %s176, 4096
        $region36: #{tpu_custom_call.1} parent=31 // pred_fallthru
          _
        // Predicated region
        $region37: #{tpu_custom_call.1} parent=31 // pred_check
          %p185 = pneg %p63
        $region38: #{tpu_custom_call.1} parent=31 // pred_check_branch
          %187 = sbr.rel (%p185) target = $region40
        $region39: #{tpu_custom_call.1} parent=31 // pred_region
          %189 = dma.done [#allocation6], 1024
        $region40: #{tpu_custom_call.1} parent=31 // pred_fallthru
          _
        %s190 = sand.u32 %s29, 1
        %s191 = scalar_lea.sflag [#allocation3], %s190
        %s192 = sand.u32 %s29, 1
        %s193 = smul.addr %s192, 256
        %s194 = scalar_lea.vmem [#allocation2], %s193
        %p195 = pneg %p42
        %p196 = pneg %p39
        %p197 = pneg %p63
        %p198 = pneg %p60
        %p199 = pneg %p84
        %p200 = pneg %p81
        %p201 = pneg %p110
        %p202 = pneg %p107
        %s203 = sand.u32 %s97, 1
        %s204 = scalar_lea.sflag [#allocation4], %s203
        %s205 = sand.u32 %s97, 1
        %s206 = smul.addr %s205, 256
        %s207 = scalar_lea.vmem [#allocation7], %s206
        %s208 = smul.u32 64, %s21
        %s209 = smul.u32 64, %s21
        %v210 = vld [vmem:[%s179] sm:$0xf]
        %v211 = vld [vmem:[%s179 + $0x4] sm:$0xf]
        %v212 = vld [vmem:[%s179 + $0x8] sm:$0xf]
        %v213 = vld [vmem:[%s179 + $0xc] sm:$0xf]
        %v214 = vld [vmem:[%s179 + $0x10] sm:$0xf]
        %v215 = vld [vmem:[%s179 + $0x14] sm:$0xf]
        %v216 = vld [vmem:[%s179 + $0x18] sm:$0xf]
        %v217 = vld [vmem:[%s179 + $0x1c] sm:$0xf]
        %v218 = vld [vmem:[%s179 + $0x20] sm:$0xf]
        %v219 = vld [vmem:[%s179 + $0x24] sm:$0xf]
        %v220 = vld [vmem:[%s179 + $0x28] sm:$0xf]
        %v221 = vld [vmem:[%s179 + $0x2c] sm:$0xf]
        %v222 = vld [vmem:[%s179 + $0x30] sm:$0xf]
        %v223 = vld [vmem:[%s179 + $0x34] sm:$0xf]
        %v224 = vld [vmem:[%s179 + $0x38] sm:$0xf]
        %v225 = vld [vmem:[%s179 + $0x3c] sm:$0xf]
        %v226 = vld [vmem:[%s179 + $0x40] sm:$0xf]
        %v227 = vld [vmem:[%s179 + $0x44] sm:$0xf]
        %v228 = vld [vmem:[%s179 + $0x48] sm:$0xf]
        %v229 = vld [vmem:[%s179 + $0x4c] sm:$0xf]
        %v230 = vld [vmem:[%s179 + $0x50] sm:$0xf]
        %v231 = vld [vmem:[%s179 + $0x54] sm:$0xf]
        %v232 = vld [vmem:[%s179 + $0x58] sm:$0xf]
        %v233 = vld [vmem:[%s179 + $0x5c] sm:$0xf]
        %v234 = vld [vmem:[%s179 + $0x60] sm:$0xf]
        %v235 = vld [vmem:[%s179 + $0x64] sm:$0xf]
        %v236 = vld [vmem:[%s179 + $0x68] sm:$0xf]
        %v237 = vld [vmem:[%s179 + $0x6c] sm:$0xf]
        %v238 = vld [vmem:[%s179 + $0x70] sm:$0xf]
        %v239 = vld [vmem:[%s179 + $0x74] sm:$0xf]
        %v240 = vld [vmem:[%s179 + $0x78] sm:$0xf]
        %v241 = vld [vmem:[%s179 + $0x7c] sm:$0xf]
        %v242 = vld [vmem:[%s179 + $0x80] sm:$0xf]
        %v243 = vld [vmem:[%s179 + $0x84] sm:$0xf]
        %v244 = vld [vmem:[%s179 + $0x88] sm:$0xf]
        %v245 = vld [vmem:[%s179 + $0x8c] sm:$0xf]
        %v246 = vld [vmem:[%s179 + $0x90] sm:$0xf]
        %v247 = vld [vmem:[%s179 + $0x94] sm:$0xf]
        %v248 = vld [vmem:[%s179 + $0x98] sm:$0xf]
        %v249 = vld [vmem:[%s179 + $0x9c] sm:$0xf]
        %v250 = vld [vmem:[%s179 + $0xa0] sm:$0xf]
        %v251 = vld [vmem:[%s179 + $0xa4] sm:$0xf]
        %v252 = vld [vmem:[%s179 + $0xa8] sm:$0xf]
        %v253 = vld [vmem:[%s179 + $0xac] sm:$0xf]
        %v254 = vld [vmem:[%s179 + $0xb0] sm:$0xf]
        %v255 = vld [vmem:[%s179 + $0xb4] sm:$0xf]
        %v256 = vld [vmem:[%s179 + $0xb8] sm:$0xf]
        %v257 = vld [vmem:[%s179 + $0xbc] sm:$0xf]
        %v258 = vld [vmem:[%s179 + $0xc0] sm:$0xf]
        %v259 = vld [vmem:[%s179 + $0xc4] sm:$0xf]
        %v260 = vld [vmem:[%s179 + $0xc8] sm:$0xf]
        %v261 = vld [vmem:[%s179 + $0xcc] sm:$0xf]
        %v262 = vld [vmem:[%s179 + $0xd0] sm:$0xf]
        %v263 = vld [vmem:[%s179 + $0xd4] sm:$0xf]
        %v264 = vld [vmem:[%s179 + $0xd8] sm:$0xf]
        %v265 = vld [vmem:[%s179 + $0xdc] sm:$0xf]
        %v266 = vld [vmem:[%s179 + $0xe0] sm:$0xf]
        %v267 = vld [vmem:[%s179 + $0xe4] sm:$0xf]
        %v268 = vld [vmem:[%s179 + $0xe8] sm:$0xf]
        %v269 = vld [vmem:[%s179 + $0xec] sm:$0xf]
        %v270 = vld [vmem:[%s179 + $0xf0] sm:$0xf]
        %v271 = vld [vmem:[%s179 + $0xf4] sm:$0xf]
        %v272 = vld [vmem:[%s179 + $0xf8] sm:$0xf]
        %v273 = vld [vmem:[%s179 + $0xfc] sm:$0xf]
        %v274 = vld [vmem:[#allocation5] sm:$0xf]
        %v275 = vld [vmem:[#allocation5 + $0x4] sm:$0xf]
        %v276 = vld [vmem:[#allocation5 + $0x8] sm:$0xf]
        %v277 = vld [vmem:[#allocation5 + $0xc] sm:$0xf]
        %v278 = vld [vmem:[#allocation5 + $0x10] sm:$0xf]
        %v279 = vld [vmem:[#allocation5 + $0x14] sm:$0xf]
        %v280 = vld [vmem:[#allocation5 + $0x18] sm:$0xf]
        %v281 = vld [vmem:[#allocation5 + $0x1c] sm:$0xf]
        %v282 = vld [vmem:[#allocation5 + $0x20] sm:$0xf]
        %v283 = vld [vmem:[#allocation5 + $0x24] sm:$0xf]
        %v284 = vld [vmem:[#allocation5 + $0x28] sm:$0xf]
        %v285 = vld [vmem:[#allocation5 + $0x2c] sm:$0xf]
        %v286 = vld [vmem:[#allocation5 + $0x30] sm:$0xf]
        %v287 = vld [vmem:[#allocation5 + $0x34] sm:$0xf]
        %v288 = vld [vmem:[#allocation5 + $0x38] sm:$0xf]
        %v289 = vld [vmem:[#allocation5 + $0x3c] sm:$0xf]
        %v290 = vld [vmem:[%s2] sm:$0x1]
        %v292 = vperm.slane %v290, 0
        %v358 = vunpack.c.l.b16 %v210
        %v359 = vunpack.c.l.b16 %v211
        %v360 = vunpack.c.l.b16 %v212
        %v361 = vunpack.c.l.b16 %v213
        %v362 = vunpack.c.l.b16 %v214
        %v363 = vunpack.c.l.b16 %v215
        %v364 = vunpack.c.l.b16 %v216
        %v365 = vunpack.c.l.b16 %v217
        %v366 = vunpack.c.l.b16 %v218
        %v367 = vunpack.c.l.b16 %v219
        %v368 = vunpack.c.l.b16 %v220
        %v369 = vunpack.c.l.b16 %v221
        %v370 = vunpack.c.l.b16 %v222
        %v371 = vunpack.c.l.b16 %v223
        %v372 = vunpack.c.l.b16 %v224
        %v373 = vunpack.c.l.b16 %v225
        %v374 = vunpack.c.l.b16 %v226
        %v375 = vunpack.c.l.b16 %v227
        %v376 = vunpack.c.l.b16 %v228
        %v377 = vunpack.c.l.b16 %v229
        %v378 = vunpack.c.l.b16 %v230
        %v379 = vunpack.c.l.b16 %v231
        %v380 = vunpack.c.l.b16 %v232
        %v381 = vunpack.c.l.b16 %v233
        %v382 = vunpack.c.l.b16 %v234
        %v383 = vunpack.c.l.b16 %v235
        %v384 = vunpack.c.l.b16 %v236
        %v385 = vunpack.c.l.b16 %v237
        %v386 = vunpack.c.l.b16 %v238
        %v387 = vunpack.c.l.b16 %v239
        %v388 = vunpack.c.l.b16 %v240
        %v389 = vunpack.c.l.b16 %v241
        %v390 = vunpack.c.l.b16 %v242
        %v391 = vunpack.c.l.b16 %v243
        %v392 = vunpack.c.l.b16 %v244
        %v393 = vunpack.c.l.b16 %v245
        %v394 = vunpack.c.l.b16 %v246
        %v395 = vunpack.c.l.b16 %v247
        %v396 = vunpack.c.l.b16 %v248
        %v397 = vunpack.c.l.b16 %v249
        %v398 = vunpack.c.l.b16 %v250
        %v399 = vunpack.c.l.b16 %v251
        %v400 = vunpack.c.l.b16 %v252
        %v401 = vunpack.c.l.b16 %v253
        %v402 = vunpack.c.l.b16 %v254
        %v403 = vunpack.c.l.b16 %v255
        %v404 = vunpack.c.l.b16 %v256
        %v405 = vunpack.c.l.b16 %v257
        %v406 = vunpack.c.l.b16 %v258
        %v407 = vunpack.c.l.b16 %v259
        %v408 = vunpack.c.l.b16 %v260
        %v409 = vunpack.c.l.b16 %v261
        %v410 = vunpack.c.l.b16 %v262
        %v411 = vunpack.c.l.b16 %v263
        %v412 = vunpack.c.l.b16 %v264
        %v413 = vunpack.c.l.b16 %v265
        %v414 = vunpack.c.l.b16 %v266
        %v415 = vunpack.c.l.b16 %v267
        %v416 = vunpack.c.l.b16 %v268
        %v417 = vunpack.c.l.b16 %v269
        %v418 = vunpack.c.l.b16 %v270
        %v419 = vunpack.c.l.b16 %v271
        %v420 = vunpack.c.l.b16 %v272
        %v421 = vunpack.c.l.b16 %v273
        %v422 = vpack.c.b16 %v359, %v358
        %v423 = vpack.c.b16 %v361, %v360
        %v424 = vpack.c.b16 %v363, %v362
        %v425 = vpack.c.b16 %v365, %v364
        %v426 = vpack.c.b16 %v367, %v366
        %v427 = vpack.c.b16 %v369, %v368
        %v428 = vpack.c.b16 %v371, %v370
        %v429 = vpack.c.b16 %v373, %v372
        %v430 = vpack.c.b16 %v375, %v374
        %v431 = vpack.c.b16 %v377, %v376
        %v432 = vpack.c.b16 %v379, %v378
        %v433 = vpack.c.b16 %v381, %v380
        %v434 = vpack.c.b16 %v383, %v382
        %v435 = vpack.c.b16 %v385, %v384
        %v436 = vpack.c.b16 %v387, %v386
        %v437 = vpack.c.b16 %v389, %v388
        %v438 = vpack.c.b16 %v391, %v390
        %v439 = vpack.c.b16 %v393, %v392
        %v440 = vpack.c.b16 %v395, %v394
        %v441 = vpack.c.b16 %v397, %v396
        %v442 = vpack.c.b16 %v399, %v398
        %v443 = vpack.c.b16 %v401, %v400
        %v444 = vpack.c.b16 %v403, %v402
        %v445 = vpack.c.b16 %v405, %v404
        %v446 = vpack.c.b16 %v407, %v406
        %v447 = vpack.c.b16 %v409, %v408
        %v448 = vpack.c.b16 %v411, %v410
        %v449 = vpack.c.b16 %v413, %v412
        %v450 = vpack.c.b16 %v415, %v414
        %v451 = vpack.c.b16 %v417, %v416
        %v452 = vpack.c.b16 %v419, %v418
        %v453 = vpack.c.b16 %v421, %v420
        %v502 = vunpack.c.l.b16 %v274
        %v503 = vunpack.c.l.b16 %v275
        %v504 = vunpack.c.l.b16 %v276
        %v505 = vunpack.c.l.b16 %v277
        %v506 = vunpack.c.l.b16 %v278
        %v507 = vunpack.c.l.b16 %v279
        %v508 = vunpack.c.l.b16 %v280
        %v509 = vunpack.c.l.b16 %v281
        %v510 = vunpack.c.l.b16 %v282
        %v511 = vunpack.c.l.b16 %v283
        %v512 = vunpack.c.l.b16 %v284
        %v513 = vunpack.c.l.b16 %v285
        %v514 = vunpack.c.l.b16 %v286
        %v515 = vunpack.c.l.b16 %v287
        %v516 = vunpack.c.l.b16 %v288
        %v517 = vunpack.c.l.b16 %v289
        %v518 = vpack.c.b16 %v503, %v502
        %v519 = vpack.c.b16 %v505, %v504
        %v520 = vpack.c.b16 %v507, %v506
        %v521 = vpack.c.b16 %v509, %v508
        %v522 = vpack.c.b16 %v511, %v510
        %v523 = vpack.c.b16 %v513, %v512
        %v524 = vpack.c.b16 %v515, %v514
        %v525 = vpack.c.b16 %v517, %v516
        %534 = vmatpush.bf16.msra.mxu0 %v525
        %535 = vmatpush.bf16.msra.mxu0 %v524
        %536 = vmatpush.bf16.msra.mxu0 %v523
        %537 = vmatpush.bf16.msra.mxu0 %v522
        %538 = vmatpush.bf16.msra.mxu0 %v521
        %539 = vmatpush.bf16.msra.mxu0 %v520
        %540 = vmatpush.bf16.msra.mxu0 %v519
        %541 = vmatpush.bf16.msra.mxu0 %v518
        %542 = vmatmul.bf16.gmra.mxu0 %v422
        %v543 = vpop.f32.mrf.mxu0
        %v544 = vadd.f32 %v292, %v543
        %v545 = vpop.f32.mrf.mxu0
        %v546 = vadd.f32 %v292, %v545
        %547 = vmatmul.bf16.gmra.mxu0 %v423
        %v548 = vpop.f32.mrf.mxu0
        %v549 = vadd.f32 %v292, %v548
        %v550 = vpop.f32.mrf.mxu0
        %v551 = vadd.f32 %v292, %v550
        %552 = vmatmul.bf16.gmra.mxu0 %v424
        %v553 = vpop.f32.mrf.mxu0
        %v554 = vadd.f32 %v292, %v553
        %v555 = vpop.f32.mrf.mxu0
        %v556 = vadd.f32 %v292, %v555
        %557 = vmatmul.bf16.gmra.mxu0 %v425
        %v558 = vpop.f32.mrf.mxu0
        %v559 = vadd.f32 %v292, %v558
        %v560 = vpop.f32.mrf.mxu0
        %v561 = vadd.f32 %v292, %v560
        %562 = vmatmul.bf16.gmra.mxu0 %v426
        %v563 = vpop.f32.mrf.mxu0
        %v564 = vadd.f32 %v292, %v563
        %v565 = vpop.f32.mrf.mxu0
        %v566 = vadd.f32 %v292, %v565
        %567 = vmatmul.bf16.gmra.mxu0 %v427
        %v568 = vpop.f32.mrf.mxu0
        %v569 = vadd.f32 %v292, %v568
        %v570 = vpop.f32.mrf.mxu0
        %v571 = vadd.f32 %v292, %v570
        %572 = vmatmul.bf16.gmra.mxu0 %v428
        %v573 = vpop.f32.mrf.mxu0
        %v574 = vadd.f32 %v292, %v573
        %v575 = vpop.f32.mrf.mxu0
        %v576 = vadd.f32 %v292, %v575
        %577 = vmatmul.bf16.gmra.mxu0 %v429
        %v578 = vpop.f32.mrf.mxu0
        %v579 = vadd.f32 %v292, %v578
        %v580 = vpop.f32.mrf.mxu0
        %v581 = vadd.f32 %v292, %v580
        %582 = vmatmul.bf16.gmra.mxu0 %v430
        %v583 = vpop.f32.mrf.mxu0
        %v584 = vadd.f32 %v292, %v583
        %v585 = vpop.f32.mrf.mxu0
        %v586 = vadd.f32 %v292, %v585
        %587 = vmatmul.bf16.gmra.mxu0 %v431
        %v588 = vpop.f32.mrf.mxu0
        %v589 = vadd.f32 %v292, %v588
        %v590 = vpop.f32.mrf.mxu0
        %v591 = vadd.f32 %v292, %v590
        %592 = vmatmul.bf16.gmra.mxu0 %v432
        %v593 = vpop.f32.mrf.mxu0
        %v594 = vadd.f32 %v292, %v593
        %v595 = vpop.f32.mrf.mxu0
        %v596 = vadd.f32 %v292, %v595
        %597 = vmatmul.bf16.gmra.mxu0 %v433
        %v598 = vpop.f32.mrf.mxu0
        %v599 = vadd.f32 %v292, %v598
        %v600 = vpop.f32.mrf.mxu0
        %v601 = vadd.f32 %v292, %v600
        %602 = vmatmul.bf16.gmra.mxu0 %v434
        %v603 = vpop.f32.mrf.mxu0
        %v604 = vadd.f32 %v292, %v603
        %v605 = vpop.f32.mrf.mxu0
        %v606 = vadd.f32 %v292, %v605
        %607 = vmatmul.bf16.gmra.mxu0 %v435
        %v608 = vpop.f32.mrf.mxu0
        %v609 = vadd.f32 %v292, %v608
        %v610 = vpop.f32.mrf.mxu0
        %v611 = vadd.f32 %v292, %v610
        %612 = vmatmul.bf16.gmra.mxu0 %v436
        %v613 = vpop.f32.mrf.mxu0
        %v614 = vadd.f32 %v292, %v613
        %v615 = vpop.f32.mrf.mxu0
        %v616 = vadd.f32 %v292, %v615
        %617 = vmatmul.bf16.gmra.mxu0 %v437
        %v618 = vpop.f32.mrf.mxu0
        %v619 = vadd.f32 %v292, %v618
        %v620 = vpop.f32.mrf.mxu0
        %v621 = vadd.f32 %v292, %v620
        %622 = vmatmul.bf16.gmra.mxu0 %v438
        %v623 = vpop.f32.mrf.mxu0
        %v624 = vadd.f32 %v292, %v623
        %v625 = vpop.f32.mrf.mxu0
        %v626 = vadd.f32 %v292, %v625
        %627 = vmatmul.bf16.gmra.mxu0 %v439
        %v628 = vpop.f32.mrf.mxu0
        %v629 = vadd.f32 %v292, %v628
        %v630 = vpop.f32.mrf.mxu0
        %v631 = vadd.f32 %v292, %v630
        %632 = vmatmul.bf16.gmra.mxu0 %v440
        %v633 = vpop.f32.mrf.mxu0
        %v634 = vadd.f32 %v292, %v633
        %v635 = vpop.f32.mrf.mxu0
        %v636 = vadd.f32 %v292, %v635
        %637 = vmatmul.bf16.gmra.mxu0 %v441
        %v638 = vpop.f32.mrf.mxu0
        %v639 = vadd.f32 %v292, %v638
        %v640 = vpop.f32.mrf.mxu0
        %v641 = vadd.f32 %v292, %v640
        %642 = vmatmul.bf16.gmra.mxu0 %v442
        %v643 = vpop.f32.mrf.mxu0
        %v644 = vadd.f32 %v292, %v643
        %v645 = vpop.f32.mrf.mxu0
        %v646 = vadd.f32 %v292, %v645
        %647 = vmatmul.bf16.gmra.mxu0 %v443
        %v648 = vpop.f32.mrf.mxu0
        %v649 = vadd.f32 %v292, %v648
        %v650 = vpop.f32.mrf.mxu0
        %v651 = vadd.f32 %v292, %v650
        %652 = vmatmul.bf16.gmra.mxu0 %v444
        %v653 = vpop.f32.mrf.mxu0
        %v654 = vadd.f32 %v292, %v653
        %v655 = vpop.f32.mrf.mxu0
        %v656 = vadd.f32 %v292, %v655
        %657 = vmatmul.bf16.gmra.mxu0 %v445
        %v658 = vpop.f32.mrf.mxu0
        %v659 = vadd.f32 %v292, %v658
        %v660 = vpop.f32.mrf.mxu0
        %v661 = vadd.f32 %v292, %v660
        %662 = vmatmul.bf16.gmra.mxu0 %v446
        %v663 = vpop.f32.mrf.mxu0
        %v664 = vadd.f32 %v292, %v663
        %v665 = vpop.f32.mrf.mxu0
        %v666 = vadd.f32 %v292, %v665
        %667 = vmatmul.bf16.gmra.mxu0 %v447
        %v668 = vpop.f32.mrf.mxu0
        %v669 = vadd.f32 %v292, %v668
        %v670 = vpop.f32.mrf.mxu0
        %v671 = vadd.f32 %v292, %v670
        %672 = vmatmul.bf16.gmra.mxu0 %v448
        %v673 = vpop.f32.mrf.mxu0
        %v674 = vadd.f32 %v292, %v673
        %v675 = vpop.f32.mrf.mxu0
        %v676 = vadd.f32 %v292, %v675
        %677 = vmatmul.bf16.gmra.mxu0 %v449
        %v678 = vpop.f32.mrf.mxu0
        %v679 = vadd.f32 %v292, %v678
        %v680 = vpop.f32.mrf.mxu0
        %v681 = vadd.f32 %v292, %v680
        %682 = vmatmul.bf16.gmra.mxu0 %v450
        %v683 = vpop.f32.mrf.mxu0
        %v684 = vadd.f32 %v292, %v683
        %v685 = vpop.f32.mrf.mxu0
        %v686 = vadd.f32 %v292, %v685
        %687 = vmatmul.bf16.gmra.mxu0 %v451
        %v688 = vpop.f32.mrf.mxu0
        %v689 = vadd.f32 %v292, %v688
        %v690 = vpop.f32.mrf.mxu0
        %v691 = vadd.f32 %v292, %v690
        %692 = vmatmul.bf16.gmra.mxu0 %v452
        %v693 = vpop.f32.mrf.mxu0
        %v694 = vadd.f32 %v292, %v693
        %v695 = vpop.f32.mrf.mxu0
        %v696 = vadd.f32 %v292, %v695
        %697 = vmatmul.bf16.gmra.mxu0 %v453
        %v698 = vpop.f32.mrf.mxu0
        %v699 = vadd.f32 %v292, %v698
        %v700 = vpop.f32.mrf.mxu0
        %v701 = vadd.f32 %v292, %v700
        %702 = vdwg.mxu0
        %v703 = vmax.f32 %v544, 0.0
        %v704 = vmax.f32 %v546, 0.0
        %v705 = vmax.f32 %v549, 0.0
        %v706 = vmax.f32 %v551, 0.0
        %v707 = vmax.f32 %v554, 0.0
        %v708 = vmax.f32 %v556, 0.0
        %v709 = vmax.f32 %v559, 0.0
        %v710 = vmax.f32 %v561, 0.0
        %v711 = vmax.f32 %v564, 0.0
        %v712 = vmax.f32 %v566, 0.0
        %v713 = vmax.f32 %v569, 0.0
        %v714 = vmax.f32 %v571, 0.0
        %v715 = vmax.f32 %v574, 0.0
        %v716 = vmax.f32 %v576, 0.0
        %v717 = vmax.f32 %v579, 0.0
        %v718 = vmax.f32 %v581, 0.0
        %v719 = vmax.f32 %v584, 0.0
        %v720 = vmax.f32 %v586, 0.0
        %v721 = vmax.f32 %v589, 0.0
        %v722 = vmax.f32 %v591, 0.0
        %v723 = vmax.f32 %v594, 0.0
        %v724 = vmax.f32 %v596, 0.0
        %v725 = vmax.f32 %v599, 0.0
        %v726 = vmax.f32 %v601, 0.0
        %v727 = vmax.f32 %v604, 0.0
        %v728 = vmax.f32 %v606, 0.0
        %v729 = vmax.f32 %v609, 0.0
        %v730 = vmax.f32 %v611, 0.0
        %v731 = vmax.f32 %v614, 0.0
        %v732 = vmax.f32 %v616, 0.0
        %v733 = vmax.f32 %v619, 0.0
        %v734 = vmax.f32 %v621, 0.0
        %v735 = vmax.f32 %v624, 0.0
        %v736 = vmax.f32 %v626, 0.0
        %v737 = vmax.f32 %v629, 0.0
        %v738 = vmax.f32 %v631, 0.0
        %v739 = vmax.f32 %v634, 0.0
        %v740 = vmax.f32 %v636, 0.0
        %v741 = vmax.f32 %v639, 0.0
        %v742 = vmax.f32 %v641, 0.0
        %v743 = vmax.f32 %v644, 0.0
        %v744 = vmax.f32 %v646, 0.0
        %v745 = vmax.f32 %v649, 0.0
        %v746 = vmax.f32 %v651, 0.0
        %v747 = vmax.f32 %v654, 0.0
        %v748 = vmax.f32 %v656, 0.0
        %v749 = vmax.f32 %v659, 0.0
        %v750 = vmax.f32 %v661, 0.0
        %v751 = vmax.f32 %v664, 0.0
        %v752 = vmax.f32 %v666, 0.0
        %v753 = vmax.f32 %v669, 0.0
        %v754 = vmax.f32 %v671, 0.0
        %v755 = vmax.f32 %v674, 0.0
        %v756 = vmax.f32 %v676, 0.0
        %v757 = vmax.f32 %v679, 0.0
        %v758 = vmax.f32 %v681, 0.0
        %v759 = vmax.f32 %v684, 0.0
        %v760 = vmax.f32 %v686, 0.0
        %v761 = vmax.f32 %v689, 0.0
        %v762 = vmax.f32 %v691, 0.0
        %v763 = vmax.f32 %v694, 0.0
        %v764 = vmax.f32 %v696, 0.0
        %v765 = vmax.f32 %v699, 0.0
        %v766 = vmax.f32 %v701, 0.0
        %v767 = vpack.c.bf16 %v703, %v703
        %v768 = vpack.c.bf16 %v704, %v704
        %v769 = vpack.c.bf16 %v705, %v705
        %v770 = vpack.c.bf16 %v706, %v706
        %v771 = vpack.c.bf16 %v707, %v707
        %v772 = vpack.c.bf16 %v708, %v708
        %v773 = vpack.c.bf16 %v709, %v709
        %v774 = vpack.c.bf16 %v710, %v710
        %v775 = vpack.c.bf16 %v711, %v711
        %v776 = vpack.c.bf16 %v712, %v712
        %v777 = vpack.c.bf16 %v713, %v713
        %v778 = vpack.c.bf16 %v714, %v714
        %v779 = vpack.c.bf16 %v715, %v715
        %v780 = vpack.c.bf16 %v716, %v716
        %v781 = vpack.c.bf16 %v717, %v717
        %v782 = vpack.c.bf16 %v718, %v718
        %v783 = vpack.c.bf16 %v719, %v719
        %v784 = vpack.c.bf16 %v720, %v720
        %v785 = vpack.c.bf16 %v721, %v721
        %v786 = vpack.c.bf16 %v722, %v722
        %v787 = vpack.c.bf16 %v723, %v723
        %v788 = vpack.c.bf16 %v724, %v724
        %v789 = vpack.c.bf16 %v725, %v725
        %v790 = vpack.c.bf16 %v726, %v726
        %v791 = vpack.c.bf16 %v727, %v727
        %v792 = vpack.c.bf16 %v728, %v728
        %v793 = vpack.c.bf16 %v729, %v729
        %v794 = vpack.c.bf16 %v730, %v730
        %v795 = vpack.c.bf16 %v731, %v731
        %v796 = vpack.c.bf16 %v732, %v732
        %v797 = vpack.c.bf16 %v733, %v733
        %v798 = vpack.c.bf16 %v734, %v734
        %v799 = vpack.c.bf16 %v735, %v735
        %v800 = vpack.c.bf16 %v736, %v736
        %v801 = vpack.c.bf16 %v737, %v737
        %v802 = vpack.c.bf16 %v738, %v738
        %v803 = vpack.c.bf16 %v739, %v739
        %v804 = vpack.c.bf16 %v740, %v740
        %v805 = vpack.c.bf16 %v741, %v741
        %v806 = vpack.c.bf16 %v742, %v742
        %v807 = vpack.c.bf16 %v743, %v743
        %v808 = vpack.c.bf16 %v744, %v744
        %v809 = vpack.c.bf16 %v745, %v745
        %v810 = vpack.c.bf16 %v746, %v746
        %v811 = vpack.c.bf16 %v747, %v747
        %v812 = vpack.c.bf16 %v748, %v748
        %v813 = vpack.c.bf16 %v749, %v749
        %v814 = vpack.c.bf16 %v750, %v750
        %v815 = vpack.c.bf16 %v751, %v751
        %v816 = vpack.c.bf16 %v752, %v752
        %v817 = vpack.c.bf16 %v753, %v753
        %v818 = vpack.c.bf16 %v754, %v754
        %v819 = vpack.c.bf16 %v755, %v755
        %v820 = vpack.c.bf16 %v756, %v756
        %v821 = vpack.c.bf16 %v757, %v757
        %v822 = vpack.c.bf16 %v758, %v758
        %v823 = vpack.c.bf16 %v759, %v759
        %v824 = vpack.c.bf16 %v760, %v760
        %v825 = vpack.c.bf16 %v761, %v761
        %v826 = vpack.c.bf16 %v762, %v762
        %v827 = vpack.c.bf16 %v763, %v763
        %v828 = vpack.c.bf16 %v764, %v764
        %v829 = vpack.c.bf16 %v765, %v765
        %v830 = vpack.c.bf16 %v766, %v766
        %831 = vst [vmem:[%s207] sm:$0xf] %v767
        %832 = vst [vmem:[%s207 + $0x4] sm:$0xf] %v768
        %833 = vst [vmem:[%s207 + $0x8] sm:$0xf] %v769
        %834 = vst [vmem:[%s207 + $0xc] sm:$0xf] %v770
        %835 = vst [vmem:[%s207 + $0x10] sm:$0xf] %v771
        %836 = vst [vmem:[%s207 + $0x14] sm:$0xf] %v772
        %837 = vst [vmem:[%s207 + $0x18] sm:$0xf] %v773
        %838 = vst [vmem:[%s207 + $0x1c] sm:$0xf] %v774
        %839 = vst [vmem:[%s207 + $0x20] sm:$0xf] %v775
        %840 = vst [vmem:[%s207 + $0x24] sm:$0xf] %v776
        %841 = vst [vmem:[%s207 + $0x28] sm:$0xf] %v777
        %842 = vst [vmem:[%s207 + $0x2c] sm:$0xf] %v778
        %843 = vst [vmem:[%s207 + $0x30] sm:$0xf] %v779
        %844 = vst [vmem:[%s207 + $0x34] sm:$0xf] %v780
        %845 = vst [vmem:[%s207 + $0x38] sm:$0xf] %v781
        %846 = vst [vmem:[%s207 + $0x3c] sm:$0xf] %v782
        %847 = vst [vmem:[%s207 + $0x40] sm:$0xf] %v783
        %848 = vst [vmem:[%s207 + $0x44] sm:$0xf] %v784
        %849 = vst [vmem:[%s207 + $0x48] sm:$0xf] %v785
        %850 = vst [vmem:[%s207 + $0x4c] sm:$0xf] %v786
        %851 = vst [vmem:[%s207 + $0x50] sm:$0xf] %v787
        %852 = vst [vmem:[%s207 + $0x54] sm:$0xf] %v788
        %853 = vst [vmem:[%s207 + $0x58] sm:$0xf] %v789
        %854 = vst [vmem:[%s207 + $0x5c] sm:$0xf] %v790
        %855 = vst [vmem:[%s207 + $0x60] sm:$0xf] %v791
        %856 = vst [vmem:[%s207 + $0x64] sm:$0xf] %v792
        %857 = vst [vmem:[%s207 + $0x68] sm:$0xf] %v793
        %858 = vst [vmem:[%s207 + $0x6c] sm:$0xf] %v794
        %859 = vst [vmem:[%s207 + $0x70] sm:$0xf] %v795
        %860 = vst [vmem:[%s207 + $0x74] sm:$0xf] %v796
        %861 = vst [vmem:[%s207 + $0x78] sm:$0xf] %v797
        %862 = vst [vmem:[%s207 + $0x7c] sm:$0xf] %v798
        %863 = vst [vmem:[%s207 + $0x80] sm:$0xf] %v799
        %864 = vst [vmem:[%s207 + $0x84] sm:$0xf] %v800
        %865 = vst [vmem:[%s207 + $0x88] sm:$0xf] %v801
        %866 = vst [vmem:[%s207 + $0x8c] sm:$0xf] %v802
        %867 = vst [vmem:[%s207 + $0x90] sm:$0xf] %v803
        %868 = vst [vmem:[%s207 + $0x94] sm:$0xf] %v804
        %869 = vst [vmem:[%s207 + $0x98] sm:$0xf] %v805
        %870 = vst [vmem:[%s207 + $0x9c] sm:$0xf] %v806
        %871 = vst [vmem:[%s207 + $0xa0] sm:$0xf] %v807
        %872 = vst [vmem:[%s207 + $0xa4] sm:$0xf] %v808
        %873 = vst [vmem:[%s207 + $0xa8] sm:$0xf] %v809
        %874 = vst [vmem:[%s207 + $0xac] sm:$0xf] %v810
        %875 = vst [vmem:[%s207 + $0xb0] sm:$0xf] %v811
        %876 = vst [vmem:[%s207 + $0xb4] sm:$0xf] %v812
        %877 = vst [vmem:[%s207 + $0xb8] sm:$0xf] %v813
        %878 = vst [vmem:[%s207 + $0xbc] sm:$0xf] %v814
        %879 = vst [vmem:[%s207 + $0xc0] sm:$0xf] %v815
        %880 = vst [vmem:[%s207 + $0xc4] sm:$0xf] %v816
        %881 = vst [vmem:[%s207 + $0xc8] sm:$0xf] %v817
        %882 = vst [vmem:[%s207 + $0xcc] sm:$0xf] %v818
        %883 = vst [vmem:[%s207 + $0xd0] sm:$0xf] %v819
        %884 = vst [vmem:[%s207 + $0xd4] sm:$0xf] %v820
        %885 = vst [vmem:[%s207 + $0xd8] sm:$0xf] %v821
        %886 = vst [vmem:[%s207 + $0xdc] sm:$0xf] %v822
        %887 = vst [vmem:[%s207 + $0xe0] sm:$0xf] %v823
        %888 = vst [vmem:[%s207 + $0xe4] sm:$0xf] %v824
        %889 = vst [vmem:[%s207 + $0xe8] sm:$0xf] %v825
        %890 = vst [vmem:[%s207 + $0xec] sm:$0xf] %v826
        %891 = vst [vmem:[%s207 + $0xf0] sm:$0xf] %v827
        %892 = vst [vmem:[%s207 + $0xf4] sm:$0xf] %v828
        %893 = vst [vmem:[%s207 + $0xf8] sm:$0xf] %v829
        %894 = vst [vmem:[%s207 + $0xfc] sm:$0xf] %v830
        %s895 = sand.u32 %s97, 1
        %s896 = scalar_lea.sflag [#allocation4], %s895
        %s897 = sand.u32 %s97, 1
        %s898 = smul.addr %s897, 256
        %s899 = scalar_lea.vmem [#allocation7], %s898
        // Predicated region
        $region41: #{tpu_custom_call.1} parent=31 // pred_check
          %p900 = pneg %p107
        $region42: #{tpu_custom_call.1} parent=31 // pred_check_branch
          %902 = sbr.rel (%p900) target = $region44
        $region43: #{tpu_custom_call.1} parent=31 // pred_region
          %s903 = smul.u32 64, %s21
          %905 = vsyncadd %s896, 0
          %s906 = smul.addr %s903, 4
          %s907 = scalar_lea.hbm %s3, %s906
          %s908 = sshll.u32 %s899, 4
          %s909 = int_to_ptr.vmem [resolvable:$true] %s908
          %s910 = sshll.u32 %s907, 4
          %s911 = int_to_ptr.hbm [resolvable:$true] %s910
          %916 = dma.vmem_to_hbm [thread:$0]  %s909, 4096, %s911, %s896, 64, 64, 4
        $region44: #{tpu_custom_call.1} parent=31 // pred_fallthru
          _
      $region32: #{tpu_custom_call.1} parent=5 // pred_fallthru
        _
      %p917 = scmp.le.s32.totalorder 2, %s16
      // Predicated region
      $region45: #{tpu_custom_call.1} parent=5 // pred_check
        %p918 = pneg %p917
      $region46: #{tpu_custom_call.1} parent=5 // pred_check_branch
        %920 = sbr.rel (%p918) target = $region48
      $region47: #{tpu_custom_call.1} parent=5 // pred_region
        %s921 = ssub.s32 %s16, 2
        // Predicated region
        $region49: #{tpu_custom_call.1} parent=47 // pred_check
          %p922 = pneg %p113
        $region50: #{tpu_custom_call.1} parent=47 // pred_check_branch
          %924 = sbr.rel (%p922) target = $region52
        $region51: #{tpu_custom_call.1} parent=47 // pred_region
          %s925 = sand.u32 %s98, 1
          %s926 = scalar_lea.sflag [#allocation4], %s925
          %s927 = sand.u32 %s98, 1
          %s928 = smul.addr %s927, 256
          %s929 = scalar_lea.vmem [#allocation7], %s928
          %931 = dma.done %s926, 4096
        $region52: #{tpu_custom_call.1} parent=47 // pred_fallthru
          _
      $region48: #{tpu_custom_call.1} parent=5 // pred_fallthru
        _
    $region6: #{tpu_custom_call.1} parent=1 // loop_footer
      %s20 = sadd.s32 1, %s16
    $region7: #{tpu_custom_call.1} parent=1 // loop_footer_branch
      %15 = sbr.rel target = $region3
    $region8: #{tpu_custom_call.1} parent=1 // loop_exit
      _
    %932 = vsyncpa [#allocation3], 1
    %s933 = scalar_lea.sflag [#allocation3], 1
    %934 = vsyncpa %s933, 1
    %935 = vsyncpa [#allocation6], 1
    %936 = vsyncpa [#allocation4], 1
    %s937 = scalar_lea.sflag [#allocation4], 1
    %938 = vsyncpa %s937, 1

</llo_original>
